<compile_context>
chip_gen: v5e
topology: v5e:2x2
jax: 0.10.0
libtpu: 0.0.40
codegen_flags: <defaults>
</compile_context>

<pallas_src>
import math

import jax
import jax.numpy as jnp
import numpy as np
from jax.experimental import pallas as pl
from jax.experimental.pallas import tpu as pltpu

# ---- constants (identical to the PyTorch module) ----------------------------
BACKWARD_ACCEL_X = 0.1
BACKWARD_ACCEL_Y = 0.005
BOOST_ACCEL = 0.1
FRAME_TIME = 0.1
L = 1.5
DELTA = 60
OMEGA_RATE = math.tan(DELTA) / L  # tan in radians, exactly as in the reference

LANES = 128            # one vreg row for the in-kernel vector math
HALF_PI = math.pi / 2.0


# ---- Pallas kernel -----------------------------------------------------------
def dynamics_kernel(state_s, action_s, out_ref):
    # scalar reads (SMEM)
    x = state_s[0, 0]
    y = state_s[0, 1]
    vx = state_s[0, 2]
    vy = state_s[0, 3]
    theta = state_s[0, 4]
    boost = action_s[0, 0]
    theta_dot = action_s[0, 1]

    col = jax.lax.broadcasted_iota(jnp.int32, (1, LANES), 1)
    odd = (col & 1) == 1                       # lanes 1, 3 -> cos path

    k = BOOST_ACCEL * FRAME_TIME               # python float, folded at trace time
    kw = k * OMEGA_RATE
    kb = k * boost                             # scalar
    half_ft = 0.5 * FRAME_TIME

    # Single EUP pass: even lanes sin(arg), odd lanes sin(arg+pi/2) == cos(arg).
    arg = theta + 90.0                         # radians, exactly as in reference
    sc = jnp.sin(jnp.where(odd, arg + HALF_PI, arg))

    # d = delta_state + delta_state_backward, interleaved per lane:
    #   even lanes use the x-backward constant (lane 2), odd lanes the y one (lane 3)
    back = jnp.where(odd, BACKWARD_ACCEL_Y * FRAME_TIME, BACKWARD_ACCEL_X * FRAME_TIME)
    d = kb * sc - back                         # lane 0/2: d2, lane 1/3: d3

    # scalar pieces of the update
    a0 = x + FRAME_TIME * vx                   # (step_mat @ s)[0]
    a1 = y + FRAME_TIME * vy                   # (step_mat @ s)[1]
    out4 = theta + kw * boost * theta + kw * theta_dot

    # new_state lanes:
    #   0: x + FT*vx + 0.5*FT*d2      1: y + FT*vy + 0.5*FT*d3
    #   2: vx + d2                    3: vy + d3
    #   4: theta + d4 + dtheta4
    out = jnp.where(col == 0, a0 + half_ft * d,
          jnp.where(col == 1, a1 + half_ft * d,
          jnp.where(col == 2, vx + d,
          jnp.where(col == 3, vy + d,
          jnp.where(col == 4, out4, 0.0)))))

    out_ref[...] = out[:, 0:5].astype(jnp.float32)


# ---- wrapper -----------------------------------------------------------------
@jax.jit
def dynamics_forward(state, action):
    """state: (1, 5) f32, action: (1, 2) f32 -> (1, 5) f32."""
    return pl.pallas_call(
        dynamics_kernel,
        out_shape=jax.ShapeDtypeStruct((1, 5), jnp.float32),
        in_specs=[
            pl.BlockSpec(memory_space=pltpu.MemorySpace.SMEM),  # state scalars
            pl.BlockSpec(memory_space=pltpu.MemorySpace.SMEM),  # action scalars
        ],
        out_specs=pl.BlockSpec(memory_space=pltpu.MemorySpace.VMEM),
        cost_estimate=pl.CostEstimate(flops=30, transcendentals=1,
                                      bytes_accessed=48),
    )(state.astype(jnp.float32), action.astype(jnp.float32))


# ---- pure-JAX reference (mirrors the PyTorch forward exactly) -----------------
def dynamics_reference(state, action):
    step_mat = jnp.array(
        [[1.0, 0.0, FRAME_TIME, 0.0, 0.0],
         [0.0, 1.0, 0.0, FRAME_TIME, 0.0],
         [0.0, 0.0, 1.0, 0.0, 0.0],
         [0.0, 0.0, 0.0, 1.0, 0.0],
         [0.0, 0.0, 0.0, 0.0, 1.0]], jnp.float32)
    shift_mat = jnp.array(
        [[0.0, 0.0, FRAME_TIME, 0.0, 0.0],
         [0.0, 0.0, 0.0, FRAME_TIME, 0.0],
         [0.0, 0.0, 0.0, 0.0, 0.0],
         [0.0, 0.0, 0.0, 0.0, 0.0],
         [0.0, 0.0, 0.0, 0.0, 0.0]], jnp.float32)
    backward = jnp.array(
        [[0.0, 0.0, -BACKWARD_ACCEL_X * FRAME_TIME,
          -BACKWARD_ACCEL_Y * FRAME_TIME, 0.0]], jnp.float32)
    theta = state[0, 4]
    st = jnp.zeros((1, 5), jnp.float32)
    st = st.at[0, 3].set(jnp.cos(theta + 90.0))
    st = st.at[0, 2].set(jnp.sin(theta + 90.0))
    st = st.at[0, 4].set(theta * OMEGA_RATE)
    delta_state = BOOST_ACCEL * FRAME_TIME * st * action[0, 0].reshape(-1, 1)
    delta_state_theta = (BOOST_ACCEL * FRAME_TIME * OMEGA_RATE
                         * jnp.array([0.0, 0.0, 0.0, 0.0, 1.0], jnp.float32)
                         * action[0, 1].reshape(-1, 1))
    s = (step_mat @ state.T
         + shift_mat @ delta_state.T * 0.5
         + shift_mat @ backward.T * 0.5).T
    return s + delta_state + backward + delta_state_theta


# ---- main ----------------------------------------------------------------------
if __name__ == "__main__":
    key = jax.random.PRNGKey(0)
    k_state, k_action = jax.random.split(key)
    state = jax.random.normal(k_state, (1, 5), dtype=jnp.float32)
    action = jax.random.normal(k_action, (1, 2), dtype=jnp.float32)

    out = dynamics_forward(state, action)
    jax.block_until_ready(out)

    ref = dynamics_reference(state, action)
    np.testing.assert_allclose(np.asarray(out), np.asarray(ref),
                               rtol=1e-4, atol=1e-4)
    print("KERNEL_OK")
</pallas_src>

<mosaic_0001>
module attributes {stable_mosaic.version = 11 : i64} {
  func.func @dynamics_kernel(%arg0: memref<1x5xf32, #tpu.memory_space<smem>>, %arg1: memref<1x2xf32, #tpu.memory_space<smem>>, %arg2: memref<1x5xf32, #tpu.memory_space<vmem>>) attributes {dimension_semantics = [], scalar_prefetch = 0 : i64, scratch_operands = 0 : i64, tpu.core_type = #tpu.core_type<tc>} {
    %c0 = arith.constant 0 : index
    %c0_0 = arith.constant 0 : index
    %0 = memref.load %arg0[%c0, %c0_0] : memref<1x5xf32, #tpu.memory_space<smem>>
    %c0_1 = arith.constant 0 : index
    %c1 = arith.constant 1 : index
    %1 = memref.load %arg0[%c0_1, %c1] : memref<1x5xf32, #tpu.memory_space<smem>>
    %c0_2 = arith.constant 0 : index
    %c2 = arith.constant 2 : index
    %2 = memref.load %arg0[%c0_2, %c2] : memref<1x5xf32, #tpu.memory_space<smem>>
    %c0_3 = arith.constant 0 : index
    %c3 = arith.constant 3 : index
    %3 = memref.load %arg0[%c0_3, %c3] : memref<1x5xf32, #tpu.memory_space<smem>>
    %c0_4 = arith.constant 0 : index
    %c4 = arith.constant 4 : index
    %4 = memref.load %arg0[%c0_4, %c4] : memref<1x5xf32, #tpu.memory_space<smem>>
    %c0_5 = arith.constant 0 : index
    %c0_6 = arith.constant 0 : index
    %5 = memref.load %arg1[%c0_5, %c0_6] : memref<1x2xf32, #tpu.memory_space<smem>>
    %c0_7 = arith.constant 0 : index
    %c1_8 = arith.constant 1 : index
    %6 = memref.load %arg1[%c0_7, %c1_8] : memref<1x2xf32, #tpu.memory_space<smem>>
    %7 = tpu.iota {dimensions = array<i32: 1>} : vector<1x128xi32>
    %c1_i32 = arith.constant 1 : i32
    %8 = vector.broadcast %c1_i32 : i32 to vector<1x128xi32>
    %9 = arith.andi %7, %8 : vector<1x128xi32>
    %c1_i32_9 = arith.constant 1 : i32
    %10 = vector.broadcast %c1_i32_9 : i32 to vector<1x128xi32>
    %11 = arith.cmpi eq, %9, %10 : vector<1x128xi32>
    %cst = arith.constant 0.00999999977 : f32
    %12 = arith.mulf %cst, %5 : f32
    %cst_10 = arith.constant 9.000000e+01 : f32
    %13 = arith.addf %4, %cst_10 : f32
    %cst_11 = arith.constant 1.57079637 : f32
    %14 = arith.addf %13, %cst_11 : f32
    %15 = vector.broadcast %14 : f32 to vector<1x128xf32>
    %16 = vector.broadcast %13 : f32 to vector<1x128xf32>
    %17 = arith.select %11, %15, %16 : vector<1x128xi1>, vector<1x128xf32>
    %18 = math.sin %17 : vector<1x128xf32>
    %cst_12 = arith.constant 5.000000e-04 : f32
    %cst_13 = arith.constant 0.00999999977 : f32
    %19 = vector.broadcast %cst_12 : f32 to vector<1x128xf32>
    %20 = vector.broadcast %cst_13 : f32 to vector<1x128xf32>
    %21 = arith.select %11, %19, %20 : vector<1x128xi1>, vector<1x128xf32>
    %22 = vector.broadcast %12 : f32 to vector<1x128xf32>
    %23 = arith.mulf %22, %18 : vector<1x128xf32>
    %24 = arith.subf %23, %21 : vector<1x128xf32>
    %cst_14 = arith.constant 1.000000e-01 : f32
    %25 = arith.mulf %cst_14, %2 : f32
    %26 = arith.addf %0, %25 : f32
    %cst_15 = arith.constant 1.000000e-01 : f32
    %27 = arith.mulf %cst_15, %3 : f32
    %28 = arith.addf %1, %27 : f32
    %cst_16 = arith.constant 0.00213360251 : f32
    %29 = arith.mulf %cst_16, %5 : f32
    %30 = arith.mulf %29, %4 : f32
    %31 = arith.addf %4, %30 : f32
    %cst_17 = arith.constant 0.00213360251 : f32
    %32 = arith.mulf %cst_17, %6 : f32
    %33 = arith.addf %31, %32 : f32
    %c0_i32 = arith.constant 0 : i32
    %34 = vector.broadcast %c0_i32 : i32 to vector<1x128xi32>
    %35 = arith.cmpi eq, %7, %34 : vector<1x128xi32>
    %cst_18 = arith.constant 5.000000e-02 : f32
    %36 = vector.broadcast %cst_18 : f32 to vector<1x128xf32>
    %37 = arith.mulf %36, %24 : vector<1x128xf32>
    %38 = vector.broadcast %26 : f32 to vector<1x128xf32>
    %39 = arith.addf %38, %37 : vector<1x128xf32>
    %c1_i32_19 = arith.constant 1 : i32
    %40 = vector.broadcast %c1_i32_19 : i32 to vector<1x128xi32>
    %41 = arith.cmpi eq, %7, %40 : vector<1x128xi32>
    %cst_20 = arith.constant 5.000000e-02 : f32
    %42 = vector.broadcast %cst_20 : f32 to vector<1x128xf32>
    %43 = arith.mulf %42, %24 : vector<1x128xf32>
    %44 = vector.broadcast %28 : f32 to vector<1x128xf32>
    %45 = arith.addf %44, %43 : vector<1x128xf32>
    %c2_i32 = arith.constant 2 : i32
    %46 = vector.broadcast %c2_i32 : i32 to vector<1x128xi32>
    %47 = arith.cmpi eq, %7, %46 : vector<1x128xi32>
    %48 = vector.broadcast %2 : f32 to vector<1x128xf32>
    %49 = arith.addf %48, %24 : vector<1x128xf32>
    %c3_i32 = arith.constant 3 : i32
    %50 = vector.broadcast %c3_i32 : i32 to vector<1x128xi32>
    %51 = arith.cmpi eq, %7, %50 : vector<1x128xi32>
    %52 = vector.broadcast %3 : f32 to vector<1x128xf32>
    %53 = arith.addf %52, %24 : vector<1x128xf32>
    %c4_i32 = arith.constant 4 : i32
    %54 = vector.broadcast %c4_i32 : i32 to vector<1x128xi32>
    %55 = arith.cmpi eq, %7, %54 : vector<1x128xi32>
    %cst_21 = arith.constant 0.000000e+00 : f32
    %56 = vector.broadcast %33 : f32 to vector<1x128xf32>
    %57 = vector.broadcast %cst_21 : f32 to vector<1x128xf32>
    %58 = arith.select %55, %56, %57 : vector<1x128xi1>, vector<1x128xf32>
    %59 = arith.select %51, %53, %58 : vector<1x128xi1>, vector<1x128xf32>
    %60 = arith.select %47, %49, %59 : vector<1x128xi1>, vector<1x128xf32>
    %61 = arith.select %41, %45, %60 : vector<1x128xi1>, vector<1x128xf32>
    %62 = arith.select %35, %39, %61 : vector<1x128xi1>, vector<1x128xf32>
    %63 = vector.extract_strided_slice %62 {offsets = [0, 0], sizes = [1, 5], strides = [1, 1]} : vector<1x128xf32> to vector<1x5xf32>
    %c0_22 = arith.constant 0 : index
    %c0_23 = arith.constant 0 : index
    %64 = vector.load %arg2[%c0_22, %c0_23] : memref<1x5xf32, #tpu.memory_space<vmem>>, vector<1x5xf32>
    tpu.vector_store %arg2[%c0_22, %c0_23], %63 {strides = array<i32>} : memref<1x5xf32, #tpu.memory_space<vmem>>, vector<1x5xf32>,
    return
  }
}

</mosaic_0001>

<llo_original>
// kernel: dynamics_forward.1
$region0: #{dynamics_forward.1}
  #allocation0 [shape = 'u32[]', space=smem, size = 0x4, offset = 0x4, fixed_abs, tag = 'smem constant byte address 0x4 - core index']
  #allocation1 [shape = 'u32[72,128]{1,0:T(1,128)}', space=vmem, size = 0x9000, scoped, tag = 'internal scratch']
  %s0 = inlined_call_operand.hbm [shape: f32[1,5], index: 0, kind: input, shape index: {}]
  %s1 = inlined_call_operand.hbm [shape: f32[1,2], index: 1, kind: input, shape index: {}]
  %s2 = inlined_call_operand.hbm [shape: f32[1,5], index: 2, kind: output, shape index: {}]
  %s3 = sld [smem:[#allocation0]]
  $region26: #{dynamics_forward.1} parent=0
    _
  %s5 = ssub.s32 1, %s3
  %s6 = scalar_select 0, %s5, %s3
  $region1: #{dynamics_forward.1} parent=0
    #allocation2 [shape = 'u8[512]{0}', space=smem, size = 0x200, scoped, tag = 'input window, operand 0, single buffered']
    #allocation3 [shape = 's32[1]{0}', space=sflag, size = 0x4, scoped, tag = 'scoped memory for dynamics_forward.1']
    #allocation4 [shape = 's32[1]{0}', space=sflag, size = 0x4, scoped, tag = 'scoped memory for dynamics_forward.1']
    #allocation5 [shape = 'u8[512]{0}', space=smem, size = 0x200, scoped, tag = 'input window, operand 1, single buffered']
    #allocation6 [shape = 's32[1]{0}', space=sflag, size = 0x4, scoped, tag = 'scoped memory for dynamics_forward.1']
    #allocation7 [shape = 'u8[512]{0}', space=vmem, size = 0x400, scoped, tag = 'output window, operand 0, single buffered']
    %7 = vsyncpa [#allocation4], 0
    %8 = vsyncpa [#allocation6], 0
    %9 = vsyncpa [#allocation3], 0
    // Predicated region
    $region2: #{dynamics_forward.1} parent=1 // pred_check
      _
    $region3: #{dynamics_forward.1} parent=1 // pred_check_branch
      %11 = sbr.rel (0) target = $region5
    $region4: #{dynamics_forward.1} parent=1 // pred_region
      %13 = vsyncadd [#allocation4], 0
      %s15 = sshll.u32 %s0, 4
      %s16 = int_to_ptr.hbm [resolvable:$true] %s15
      %18 = dma.hbm_to_smem %s16, 16, [#allocation2], [#allocation4]
    $region5: #{dynamics_forward.1} parent=1 // pred_fallthru
      _
    // Predicated region
    $region6: #{dynamics_forward.1} parent=1 // pred_check
      _
    $region7: #{dynamics_forward.1} parent=1 // pred_check_branch
      %20 = sbr.rel (0) target = $region9
    $region8: #{dynamics_forward.1} parent=1 // pred_region
      %22 = vsyncadd [#allocation6], 0
      %s24 = sshll.u32 %s1, 4
      %s25 = int_to_ptr.hbm [resolvable:$true] %s24
      %27 = dma.hbm_to_smem %s25, 16, [#allocation5], [#allocation6]
    $region9: #{dynamics_forward.1} parent=1 // pred_fallthru
      _
    // Predicated region
    $region10: #{dynamics_forward.1} parent=1 // pred_check
      _
    $region11: #{dynamics_forward.1} parent=1 // pred_check_branch
      %29 = sbr.rel (0) target = $region13
    $region12: #{dynamics_forward.1} parent=1 // pred_region
      %31 = dma.done [#allocation4], 16
    $region13: #{dynamics_forward.1} parent=1 // pred_fallthru
      _
    // Predicated region
    $region14: #{dynamics_forward.1} parent=1 // pred_check
      _
    $region15: #{dynamics_forward.1} parent=1 // pred_check_branch
      %33 = sbr.rel (0) target = $region17
    $region16: #{dynamics_forward.1} parent=1 // pred_region
      %35 = dma.done [#allocation6], 16
    $region17: #{dynamics_forward.1} parent=1 // pred_fallthru
      _
    %36 = sfence
    %s37 = sld [smem:[#allocation2]]
    %s38 = sld [smem:[#allocation2 + $0x1]]
    %s39 = sld [smem:[#allocation2 + $0x2]]
    %s40 = sld [smem:[#allocation2 + $0x3]]
    %s41 = sld [smem:[#allocation2 + $0x4]]
    %s42 = sld [smem:[#allocation5]]
    %s43 = sld [smem:[#allocation5 + $0x1]]
    %v44 = vlaneseq
    %v45 = vand.u32 %v44, 127
    %v46 = vand.u32 %v45, 1
    %vm47 = vcmp.eq.s32.totalorder %v46, 1
    %s48 = smul.f32 %s42, 0.01
    %s49 = sadd.f32 %s41, 90.0
    %s50 = sadd.f32 %s49, 1.5707964
    %v51 = vstv %s50
    %v52 = vstv %s49
    %v53 = vsel %vm47, %v51, %v52
    %v54 = vand.u32 2147483647, %v53
    %vm55 = vcmp.le.f32.partialorder %v54, 0.7853982
    %vm56 = vcmp.lt.s32.totalorder %v53, 0
    %v57 = vand.u32 %v53, 2139095040
    %v58 = vshrl.u32 %v57, 23
    %v59 = vsub.s32 %v58, 127
    %v60 = vand.u32 2147483647, %v53
    %v61 = vand.u32 %v60, 8388607
    %v62 = vor.u32 %v61, 8388608
    %v63 = vsub.s32 0, %v62
    %v64 = vadd.s32 %v59, 1
    %vm65 = vcmp.gt.s32.totalorder %v64, 0
    %v66 = vsel %vm65, %v64, 0
    %v67 = vshrl.u32 %v66, 5
    %v68 = vand.u32 %v66, 31
    %v69 = vsub.s32 32, %v68
    %v70 = vshrl.u32 683565275, %v69
    %v71 = vshll.u32 683565275, %v68
    %v72 = vshrl.u32 2475754826, %v69
    %v73 = vor.u32 %v71, %v72
    %v74 = vshll.u32 2475754826, %v68
    %v75 = vshrl.u32 2131351028, %v69
    %v76 = vor.u32 %v74, %v75
    %v77 = vshll.u32 2131351028, %v68
    %v78 = vshrl.u32 2102212464, %v69
    %v79 = vor.u32 %v77, %v78
    %v80 = vshll.u32 2102212464, %v68
    %v81 = vshrl.u32 920167782, %v69
    %v82 = vor.u32 %v80, %v81
    %v83 = vshll.u32 920167782, %v68
    %v84 = vshrl.u32 1326507024, %v69
    %v85 = vor.u32 %v83, %v84
    %vm86 = vcmp.lt.s32.totalorder %v67, 1
    %vm87 = vcmp.lt.s32.totalorder %v67, 2
    %vm88 = vcmp.lt.s32.totalorder %v67, 3
    %vm89 = vcmp.lt.s32.totalorder %v67, 4
    %v90 = vsel %vm86, %v70, %v73
    %v91 = vsel %vm89, %v79, 2102212464
    %v92 = vsel %vm88, %v76, %v91
    %v93 = vsel %vm87, %v90, %v92
    %v94 = vsel %vm86, %v73, %v76
    %v95 = vsel %vm89, %v82, 920167782
    %v96 = vsel %vm88, %v79, %v95
    %v97 = vsel %vm87, %v94, %v96
    %v98 = vsel %vm86, %v76, %v79
    %v99 = vsel %vm89, %v85, 1326507024
    %v100 = vsel %vm88, %v82, %v99
    %v101 = vsel %vm87, %v98, %v100
    %v102 = vshll.u32 %v62, 8
    %v103 = vand.u32 %v102, 65535
    %v104 = vshrl.u32 %v102, 16
    %v105 = vand.u32 %v101, 65535
    %v106 = vshrl.u32 %v101, 16
    %v107 = vmul.u32 %v103, %v105
    %v108 = vmul.u32 %v103, %v106
    %v109 = vmul.u32 %v104, %v105
    %v110 = vmul.u32 %v104, %v106
    %v111 = vshll.u32 %v108, 16
    %v112 = vshrl.u32 %v108, 16
    %v113 = vshll.u32 %v109, 16
    %v114 = vshrl.u32 %v109, 16
    %vm115 = vc.u32 %v107, %v111
    %v116 = vsel %vm115, 1, 0
    %v117 = vadd.s32 %v107, %v111
    %v118 = vadd.s32 %v110, %v116
    %vm119 = vc.u32 %v117, %v113
    %v120 = vsel %vm119, 1, 0
    %v121 = vadd.s32 %v117, %v113
    %v122 = vadd.s32 %v118, %v120
    %v123 = vadd.s32 %v122, %v112
    %v124 = vadd.s32 %v123, %v114
    %v125 = vand.u32 %v102, 65535
    %v126 = vshrl.u32 %v102, 16
    %v127 = vand.u32 %v97, 65535
    %v128 = vshrl.u32 %v97, 16
    %v129 = vmul.u32 %v125, %v127
    %v130 = vmul.u32 %v125, %v128
    %v131 = vmul.u32 %v126, %v127
    %v132 = vmul.u32 %v126, %v128
    %v133 = vshll.u32 %v130, 16
    %v134 = vshrl.u32 %v130, 16
    %v135 = vshll.u32 %v131, 16
    %v136 = vshrl.u32 %v131, 16
    %vm137 = vc.u32 %v129, %v133
    %v138 = vsel %vm137, 1, 0
    %v139 = vadd.s32 %v129, %v133
    %v140 = vadd.s32 %v132, %v138
    %vm141 = vc.u32 %v139, %v135
    %v142 = vsel %vm141, 1, 0
    %v143 = vadd.s32 %v139, %v135
    %v144 = vadd.s32 %v140, %v142
    %v145 = vadd.s32 %v144, %v134
    %v146 = vadd.s32 %v145, %v136
    %v147 = vmul.u32 %v102, %v93
    %v148 = vadd.s32 %v124, %v143
    %vm149 = vc.u32 %v124, %v143
    %v150 = vadd.s32 %v146, 1
    %v151 = vsel %vm149, %v150, %v146
    %v152 = vadd.s32 %v147, %v151
    %v153 = vadd.s32 %v152, 536870912
    %v154 = vshrl.u32 %v153, 30
    %v155 = vshll.u32 %v154, 30
    %v156 = vsub.s32 %v152, %v155
    %vm157 = vcmp.lt.s32.totalorder %v156, 0
    %v158 = vsub.s32 0, %v156
    %v159 = vsel %vm157, %v158, %v156
    %v160 = vclz %v159
    %v161 = vsub.s32 %v160, 2
    %vm162 = vcmp.gt.s32.totalorder 0, %v161
    %v163 = vsel %vm162, 0, %v161
    %v164 = vsub.s32 32, %v163
    %v165 = vshll.u32 %v156, %v163
    %v166 = vshrl.u32 %v148, %v164
    %v167 = vor.u32 %v165, %v166
    %v168 = vsub.s32 4294967266, %v163
    %v169 = vadd.s32 %v168, 127
    %v170 = vshll.u32 %v169, 23
    %v171 = vor.u32 4788187, %v170
    %v172 = vand.u32 2147483647, %v171
    %v174 = vcvt.s32.f32 %v167
    %v175 = vmul.f32 %v174, %v172
    %v176 = vxor.u32 %v175, 2147483648
    %v177 = vsel %vm56, %v176, %v175
    %v178 = vsub.s32 4, %v154
    %v179 = vsel %vm56, %v178, %v154
    %v180 = vsel %vm55, %v53, %v177
    %v181 = vsel %vm55, 0, %v179
    %v182 = vmul.f32 %v180, %v180
    %v183 = vmul.f32 %v182, -0.001358992
    %v184 = vadd.f32 %v183, 0.041655596
    %v185 = vmul.f32 %v182, %v184
    %v186 = vadd.f32 %v185, -0.4999988
    %v187 = vmul.f32 %v182, %v186
    %v188 = vadd.f32 1.0, %v187
    %v189 = vmul.f32 %v180, %v180
    %v190 = vmul.f32 %v189, -0.00019511016
    %v191 = vadd.f32 %v190, 0.008332121
    %v192 = vmul.f32 %v189, %v191
    %v193 = vadd.f32 %v192, -0.16666654
    %v194 = vmul.f32 %v189, %v193
    %v195 = vadd.f32 %v194, 1.0
    %v196 = vmul.f32 %v195, %v180
    %vm197 = vweird.f32 %v53
    %v198 = vadd.s32 %v181, 3
    %v199 = vand.u32 %v198, 3
    %vm200 = vcmp.lt.s32.totalorder %v199, 2
    %vm201 = vcmp.eq.s32.totalorder %v199, 0
    %v202 = vxor.u32 %v196, 2147483648
    %v203 = vsel %vm201, %v188, %v202
    %vm204 = vcmp.eq.s32.totalorder %v199, 2
    %v205 = vxor.u32 %v188, 2147483648
    %v206 = vsel %vm204, %v205, %v196
    %v207 = vsel %vm200, %v203, %v206
    %v208 = vsel %vm197, nan, %v207
    %v209 = vsel %vm47, 0.0005, 0.01
    %v210 = vstv %s48
    %v211 = vmul.f32 %v210, %v208
    %v212 = vsub.f32 %v211, %v209
    %s213 = smul.f32 %s39, 0.1
    %s214 = sadd.f32 %s37, %s213
    %s215 = smul.f32 %s40, 0.1
    %s216 = sadd.f32 %s38, %s215
    %s217 = smul.f32 %s42, 0.0021336025
    %s218 = smul.f32 %s217, %s41
    %s219 = sadd.f32 %s41, %s218
    %s220 = smul.f32 %s43, 0.0021336025
    %s221 = sadd.f32 %s219, %s220
    %vm222 = vcmp.eq.s32.totalorder %v45, 0
    %v223 = vmul.f32 %v212, 0.05
    %v224 = vstv %s214
    %v225 = vadd.f32 %v224, %v223
    %vm226 = vcmp.eq.s32.totalorder %v45, 1
    %v227 = vstv %s216
    %v228 = vadd.f32 %v227, %v223
    %vm229 = vcmp.eq.s32.totalorder %v45, 2
    %v230 = vstv %s39
    %v231 = vadd.f32 %v230, %v212
    %vm232 = vcmp.eq.s32.totalorder %v45, 3
    %v233 = vstv %s40
    %v234 = vadd.f32 %v233, %v212
    %vm235 = vcmp.eq.s32.totalorder %v45, 4
    %v236 = vstv %s221
    %v237 = vsel %vm235, %v236, 0.0
    %v238 = vsel %vm232, %v234, %v237
    %v239 = vsel %vm229, %v231, %v238
    %v240 = vsel %vm226, %v228, %v239
    %v241 = vsel %vm222, %v225, %v240
    %vm242 = vcmask 32768
    %243 = vst.msk [vmem:[#allocation7] sm:$0x1] %vm242, %v241
    // Predicated region
    $region18: #{dynamics_forward.1} parent=1 // pred_check
      _
    $region19: #{dynamics_forward.1} parent=1 // pred_check_branch
      %245 = sbr.rel (0) target = $region21
    $region20: #{dynamics_forward.1} parent=1 // pred_region
      %247 = vsyncadd [#allocation3], 0
      %s249 = sshll.u32 [#allocation7], 4
      %s250 = int_to_ptr.vmem [resolvable:$true] %s249
      %s251 = sshll.u32 %s2, 4
      %s252 = int_to_ptr.hbm [resolvable:$true] %s251
      %254 = dma.vmem_to_hbm [thread:$0]  %s250, 16, %s252, [#allocation3]
    $region21: #{dynamics_forward.1} parent=1 // pred_fallthru
      _
    // Predicated region
    $region22: #{dynamics_forward.1} parent=1 // pred_check
      _
    $region23: #{dynamics_forward.1} parent=1 // pred_check_branch
      %256 = sbr.rel (0) target = $region25
    $region24: #{dynamics_forward.1} parent=1 // pred_region
      %258 = dma.done [#allocation3], 16
    $region25: #{dynamics_forward.1} parent=1 // pred_fallthru
      _
    %259 = vsyncpa [#allocation3], 1
    %260 = vsyncpa [#allocation4], 1
    %261 = vsyncpa [#allocation6], 1

</llo_original>
